<compile_context>
chip_gen: v7x
topology: tpu7x:2x2x1
jax: 0.10.0
libtpu: 0.0.40
codegen_flags: <defaults>
</compile_context>

<pallas_src>
import functools

import jax
import jax.numpy as jnp
from jax.experimental import pallas as pl
from jax.experimental.pallas import tpu as pltpu


def _round_up(x, m):
    return (x + m - 1) // m * m


def bigram_lm_kernel(idx_ref, tok_tab_ref, pos_ref, wk_ref, wq_ref, wv_ref,
                     wlm_ref, blm_ref, out_ref, *, batch, seq, n_emd):
    # idx_ref:     (B*T, 1)    int32 token ids
    # tok_tab_ref: (V_pad, C_pad) bf16 token embedding table
    # pos_ref:     (T, C_pad)  bf16 position embeddings
    # wk/wq/wv:    (C_pad, C_pad) bf16
    # wlm_ref:     (C_pad, V_pad) bf16 ; blm_ref: (1, V_pad) f32
    # out_ref:     (B*T, V_pad) f32  (lane-dense logits slab)
    bt = batch * seq
    c_pad = tok_tab_ref.shape[1]
    v_tab = tok_tab_ref.shape[0]

    # ---- fused embedding lookup: one-hot(idx) @ tok_table (runs on the MXU) ----
    ids = idx_ref[...]                                               # (BT, 1) int32
    vocab_iota = jax.lax.broadcasted_iota(jnp.int32, (bt, v_tab), 1)
    onehot = jnp.where(vocab_iota == ids, 1.0, 0.0).astype(jnp.bfloat16)   # (BT, Vp)
    tok = jnp.dot(onehot, tok_tab_ref[...],
                  preferred_element_type=jnp.float32)                # (BT, Cp) f32

    pos = jnp.tile(pos_ref[...].astype(jnp.float32), (batch, 1))     # (BT, Cp) f32
    x = (tok + pos).astype(jnp.bfloat16)                             # bf16 MXU operand

    # ---- q/k/v projections over all B*T rows in one matmul each ----
    k = jnp.dot(x, wk_ref[...], preferred_element_type=jnp.float32)  # (BT, Cp)
    q = jnp.dot(x, wq_ref[...], preferred_element_type=jnp.float32)
    v = jnp.dot(x, wv_ref[...], preferred_element_type=jnp.float32)

    qb = q.reshape(batch, seq, c_pad).astype(jnp.bfloat16)
    kb = k.reshape(batch, seq, c_pad).astype(jnp.bfloat16)
    vb = v.reshape(batch, seq, c_pad).astype(jnp.bfloat16)

    # ---- attention scores: contract last axes (no materialized transpose) ----
    scale = float(n_emd) ** -0.5                                     # torch uses C = n_emd
    attn = jnp.einsum('bqd,bkd->bqk', qb, kb,
                      preferred_element_type=jnp.float32) * scale    # (B, T, T) f32

    # causal mask + softmax (f32)
    row = jax.lax.broadcasted_iota(jnp.int32, (batch, seq, seq), 1)
    col = jax.lax.broadcasted_iota(jnp.int32, (batch, seq, seq), 2)
    masked = jnp.where(col <= row, attn, -1e30)
    m = jnp.max(masked, axis=-1, keepdims=True)
    p = jnp.exp(masked - m)
    denom = jnp.sum(p, axis=-1, keepdims=True)
    wei = p * pl.reciprocal(denom, approx=True)                      # EUP, not VALU

    out = jnp.einsum('bqk,bkd->bqd', wei.astype(jnp.bfloat16), vb,
                     preferred_element_type=jnp.float32)             # (B, T, Cp)

    # ---- lm_head over all rows; lane-dense V_pad output ----
    o2 = out.reshape(bt, c_pad).astype(jnp.bfloat16)
    logits = jnp.dot(o2, wlm_ref[...],
                     preferred_element_type=jnp.float32) + blm_ref[...]
    out_ref[...] = logits


def prepare_params(params):
    """One-time prep: pad C / V to 128 lanes and cast MXU operands to bf16."""
    C = params["w_k"].shape[0]
    V = params["w_lm"].shape[1]
    Vt = params["tok_emb"].shape[0]
    Cp = _round_up(C, 128)
    Vp = _round_up(V, 128)
    Vtp = _round_up(Vt, 128)

    def pad2(a, r, c):
        return jnp.pad(a, ((0, r - a.shape[0]), (0, c - a.shape[1])))

    return {
        "tok_emb": pad2(params["tok_emb"], Vtp, Cp).astype(jnp.bfloat16),
        "pos_emb": pad2(params["pos_emb"], params["pos_emb"].shape[0], Cp
                        ).astype(jnp.bfloat16),
        "w_k": pad2(params["w_k"], Cp, Cp).astype(jnp.bfloat16),
        "w_q": pad2(params["w_q"], Cp, Cp).astype(jnp.bfloat16),
        "w_v": pad2(params["w_v"], Cp, Cp).astype(jnp.bfloat16),
        "w_lm": pad2(params["w_lm"], Cp, Vp).astype(jnp.bfloat16),
        "b_lm": pad2(params["b_lm"], 1, Vp).astype(jnp.float32),
        "n_emd": C,
        "vocab": V,
        "c_pad": Cp,
        "v_pad": Vp,
    }


def bigram_lm_forward(idx, pparams, targets=None):
    """Forward pass with prepared (padded / bf16) params. Returns (logits, loss)."""
    B, T = idx.shape
    BT = B * T
    V = pparams["vocab"]
    Vp = pparams["v_pad"]

    idx2 = idx.reshape(BT, 1).astype(jnp.int32)
    pos = pparams["pos_emb"][:T]                       # (T, C_pad)

    kernel = functools.partial(bigram_lm_kernel, batch=B, seq=T,
                               n_emd=pparams["n_emd"])
    vmem = lambda: pl.BlockSpec(memory_space=pltpu.MemorySpace.VMEM)

    logits_pad = pl.pallas_call(
        kernel,
        out_shape=jax.ShapeDtypeStruct((BT, Vp), jnp.float32),
        in_specs=[vmem() for _ in range(8)],
        out_specs=vmem(),
    )(idx2, pparams["tok_emb"], pos, pparams["w_k"], pparams["w_q"],
      pparams["w_v"], pparams["w_lm"], pparams["b_lm"])

    logits = logits_pad[:, :V].reshape(B, T, V)        # drop padded vocab columns

    loss = None
    if targets is not None:
        # Loss path computed in plain JAX on the real (unpadded) vocab columns.
        flat = logits.reshape(BT, V)
        tgt = targets.reshape(BT)
        logp = jax.nn.log_softmax(flat, axis=-1)
        loss = -jnp.mean(jnp.take_along_axis(logp, tgt[:, None], axis=-1))
    return logits, loss


def init_params(key, vocab_size, block_size, n_emd):
    ks = jax.random.split(key, 7)
    scale = 0.02
    return {
        "tok_emb": scale * jax.random.normal(ks[0], (vocab_size, n_emd), jnp.float32),
        "pos_emb": scale * jax.random.normal(ks[1], (block_size, n_emd), jnp.float32),
        "w_k": scale * jax.random.normal(ks[2], (n_emd, n_emd), jnp.float32),
        "w_q": scale * jax.random.normal(ks[3], (n_emd, n_emd), jnp.float32),
        "w_v": scale * jax.random.normal(ks[4], (n_emd, n_emd), jnp.float32),
        "w_lm": scale * jax.random.normal(ks[5], (n_emd, vocab_size), jnp.float32),
        "b_lm": scale * jax.random.normal(ks[6], (1, vocab_size), jnp.float32),
    }


def reference_forward(idx, params):
    """Pure-JAX f32 reference matching the torch module."""
    T = idx.shape[1]
    C = params["w_k"].shape[0]
    x = params["tok_emb"][idx] + params["pos_emb"][:T][None]         # (B, T, C)
    k = x @ params["w_k"]
    q = x @ params["w_q"]
    v = x @ params["w_v"]
    attn = jnp.einsum('bqd,bkd->bqk', q, k) * (C ** -0.5)
    mask = jnp.tril(jnp.ones((T, T), bool))
    attn = jnp.where(mask[None], attn, -jnp.inf)
    wei = jax.nn.softmax(attn, axis=-1)
    out = jnp.einsum('bqk,bkd->bqd', wei, v)
    return out @ params["w_lm"] + params["b_lm"]


if __name__ == "__main__":
    vocab_size, block_size, n_emd = 64, 8, 32
    B, T = 2, 8

    key = jax.random.PRNGKey(0)
    pkey, ikey = jax.random.split(key)
    params = init_params(pkey, vocab_size, block_size, n_emd)
    pparams = prepare_params(params)
    idx = jax.random.randint(ikey, (B, T), 0, vocab_size, dtype=jnp.int32)

    logits, loss = bigram_lm_forward(idx, pparams)
    logits = jax.block_until_ready(logits)
    assert logits.shape == (B, T, vocab_size)
    assert loss is None

    ref = reference_forward(idx, params)
    err = float(jnp.max(jnp.abs(logits - ref)))
    assert err < 2e-3, f"max abs error vs reference: {err}"

    print("KERNEL_OK")
</pallas_src>

<mosaic_0001>
module attributes {stable_mosaic.version = 11 : i64} {
  func.func @bigram_lm_kernel(%arg0: memref<16x1xi32, #tpu.memory_space<vmem>>, %arg1: memref<128x128xbf16, #tpu.memory_space<vmem>>, %arg2: memref<8x128xbf16, #tpu.memory_space<vmem>>, %arg3: memref<128x128xbf16, #tpu.memory_space<vmem>>, %arg4: memref<128x128xbf16, #tpu.memory_space<vmem>>, %arg5: memref<128x128xbf16, #tpu.memory_space<vmem>>, %arg6: memref<128x128xbf16, #tpu.memory_space<vmem>>, %arg7: memref<1x128xf32, #tpu.memory_space<vmem>>, %arg8: memref<16x128xf32, #tpu.memory_space<vmem>>) attributes {dimension_semantics = [], scalar_prefetch = 0 : i64, scratch_operands = 0 : i64, tpu.core_type = #tpu.core_type<tc>} {
    %c0 = arith.constant 0 : index
    %c0_0 = arith.constant 0 : index
    %0 = vector.load %arg0[%c0, %c0_0] : memref<16x1xi32, #tpu.memory_space<vmem>>, vector<16x1xi32>
    %1 = tpu.iota {dimensions = array<i32: 1>} : vector<16x128xi32>
    %2 = vector.broadcast %0 : vector<16x1xi32> to vector<16x128xi32>
    %3 = arith.cmpi eq, %1, %2 : vector<16x128xi32>
    %cst = arith.constant 1.000000e+00 : f32
    %cst_1 = arith.constant 0.000000e+00 : f32
    %4 = vector.broadcast %cst : f32 to vector<16x128xf32>
    %5 = vector.broadcast %cst_1 : f32 to vector<16x128xf32>
    %6 = arith.select %3, %4, %5 : vector<16x128xi1>, vector<16x128xf32>
    %7 = arith.truncf %6 : vector<16x128xf32> to vector<16x128xbf16>
    %c0_2 = arith.constant 0 : index
    %c0_3 = arith.constant 0 : index
    %8 = vector.load %arg1[%c0_2, %c0_3] : memref<128x128xbf16, #tpu.memory_space<vmem>>, vector<128x128xbf16>
    %cst_4 = arith.constant dense<0.000000e+00> : vector<16x128xf32>
    %9 = tpu.matmul %7, %8, %cst_4 {dimension_numbers = #tpu.dot_dimension_numbers<[1], [0], [0], [1], [0, 0, 1, 1], [], []>} : vector<16x128xbf16>, vector<128x128xbf16>, vector<16x128xf32> -> vector<16x128xf32>
    %c0_5 = arith.constant 0 : index
    %c0_6 = arith.constant 0 : index
    %10 = vector.load %arg2[%c0_5, %c0_6] : memref<8x128xbf16, #tpu.memory_space<vmem>>, vector<8x128xbf16>
    %11 = arith.extf %10 : vector<8x128xbf16> to vector<8x128xf32>
    %12 = tpu.concatenate %11, %11 in 0 : vector<8x128xf32>, vector<8x128xf32> -> vector<16x128xf32>
    %13 = arith.addf %9, %12 : vector<16x128xf32>
    %14 = arith.truncf %13 : vector<16x128xf32> to vector<16x128xbf16>
    %c0_7 = arith.constant 0 : index
    %c0_8 = arith.constant 0 : index
    %15 = vector.load %arg3[%c0_7, %c0_8] : memref<128x128xbf16, #tpu.memory_space<vmem>>, vector<128x128xbf16>
    %cst_9 = arith.constant dense<0.000000e+00> : vector<16x128xf32>
    %16 = tpu.matmul %14, %15, %cst_9 {dimension_numbers = #tpu.dot_dimension_numbers<[1], [0], [0], [1], [0, 0, 1, 1], [], []>} : vector<16x128xbf16>, vector<128x128xbf16>, vector<16x128xf32> -> vector<16x128xf32>
    %c0_10 = arith.constant 0 : index
    %c0_11 = arith.constant 0 : index
    %17 = vector.load %arg4[%c0_10, %c0_11] : memref<128x128xbf16, #tpu.memory_space<vmem>>, vector<128x128xbf16>
    %cst_12 = arith.constant dense<0.000000e+00> : vector<16x128xf32>
    %18 = tpu.matmul %14, %17, %cst_12 {dimension_numbers = #tpu.dot_dimension_numbers<[1], [0], [0], [1], [0, 0, 1, 1], [], []>} : vector<16x128xbf16>, vector<128x128xbf16>, vector<16x128xf32> -> vector<16x128xf32>
    %c0_13 = arith.constant 0 : index
    %c0_14 = arith.constant 0 : index
    %19 = vector.load %arg5[%c0_13, %c0_14] : memref<128x128xbf16, #tpu.memory_space<vmem>>, vector<128x128xbf16>
    %cst_15 = arith.constant dense<0.000000e+00> : vector<16x128xf32>
    %20 = tpu.matmul %14, %19, %cst_15 {dimension_numbers = #tpu.dot_dimension_numbers<[1], [0], [0], [1], [0, 0, 1, 1], [], []>} : vector<16x128xbf16>, vector<128x128xbf16>, vector<16x128xf32> -> vector<16x128xf32>
    %21 = vector.shape_cast %18 : vector<16x128xf32> to vector<2x8x128xf32>
    %22 = arith.truncf %21 : vector<2x8x128xf32> to vector<2x8x128xbf16>
    %23 = vector.shape_cast %16 : vector<16x128xf32> to vector<2x8x128xf32>
    %24 = arith.truncf %23 : vector<2x8x128xf32> to vector<2x8x128xbf16>
    %25 = vector.shape_cast %20 : vector<16x128xf32> to vector<2x8x128xf32>
    %26 = arith.truncf %25 : vector<2x8x128xf32> to vector<2x8x128xbf16>
    "tpu.trace_start"() <{level = 10 : i32, message = "bqd,bkd->bqk"}> : () -> ()
    %cst_16 = arith.constant dense<0.000000e+00> : vector<2x8x8xf32>
    %27 = tpu.matmul %22, %24, %cst_16 {dimension_numbers = #tpu.dot_dimension_numbers<[2], [2], [1], [1], [0, 0, 0, 1, 1, 1], [0], [0]>} : vector<2x8x128xbf16>, vector<2x8x128xbf16>, vector<2x8x8xf32> -> vector<2x8x8xf32>
    "tpu.trace_stop"() : () -> ()
    %cst_17 = arith.constant 0.176776692 : f32
    %28 = vector.broadcast %cst_17 : f32 to vector<2x8x8xf32>
    %29 = arith.mulf %27, %28 : vector<2x8x8xf32>
    %30 = tpu.iota {dimensions = array<i32: 1>} : vector<2x8x8xi32>
    %31 = tpu.iota {dimensions = array<i32: 2>} : vector<2x8x8xi32>
    %32 = arith.cmpi sle, %31, %30 : vector<2x8x8xi32>
    %cst_18 = arith.constant -1.000000e+30 : f32
    %33 = vector.broadcast %cst_18 : f32 to vector<2x8x8xf32>
    %34 = arith.select %32, %29, %33 : vector<2x8x8xi1>, vector<2x8x8xf32>
    %cst_19 = arith.constant dense<0xFF800000> : vector<2x8xf32>
    %35 = vector.multi_reduction <maximumf>, %34, %cst_19 [2] : vector<2x8x8xf32> to vector<2x8xf32>
    %36 = vector.shape_cast %35 : vector<2x8xf32> to vector<2x8x1xf32>
    %37 = vector.broadcast %36 : vector<2x8x1xf32> to vector<2x8x8xf32>
    %38 = arith.subf %34, %37 : vector<2x8x8xf32>
    %39 = math.exp %38 : vector<2x8x8xf32>
    %cst_20 = arith.constant dense<0.000000e+00> : vector<2x8xf32>
    %40 = vector.multi_reduction <add>, %39, %cst_20 [2] : vector<2x8x8xf32> to vector<2x8xf32>
    %41 = vector.shape_cast %40 : vector<2x8xf32> to vector<2x8x1xf32>
    %42 = tpu.reciprocal %41 {approx = true} : vector<2x8x1xf32> -> vector<2x8x1xf32>
    %43 = vector.broadcast %42 : vector<2x8x1xf32> to vector<2x8x8xf32>
    %44 = arith.mulf %39, %43 : vector<2x8x8xf32>
    %45 = arith.truncf %44 : vector<2x8x8xf32> to vector<2x8x8xbf16>
    "tpu.trace_start"() <{level = 10 : i32, message = "bqk,bkd->bqd"}> : () -> ()
    %cst_21 = arith.constant dense<0.000000e+00> : vector<2x8x128xf32>
    %46 = tpu.matmul %45, %26, %cst_21 {dimension_numbers = #tpu.dot_dimension_numbers<[2], [1], [1], [2], [0, 0, 0, 1, 1, 2], [0], [0]>} : vector<2x8x8xbf16>, vector<2x8x128xbf16>, vector<2x8x128xf32> -> vector<2x8x128xf32>
    "tpu.trace_stop"() : () -> ()
    %47 = vector.shape_cast %46 : vector<2x8x128xf32> to vector<16x128xf32>
    %48 = arith.truncf %47 : vector<16x128xf32> to vector<16x128xbf16>
    %c0_22 = arith.constant 0 : index
    %c0_23 = arith.constant 0 : index
    %49 = vector.load %arg6[%c0_22, %c0_23] : memref<128x128xbf16, #tpu.memory_space<vmem>>, vector<128x128xbf16>
    %cst_24 = arith.constant dense<0.000000e+00> : vector<16x128xf32>
    %50 = tpu.matmul %48, %49, %cst_24 {dimension_numbers = #tpu.dot_dimension_numbers<[1], [0], [0], [1], [0, 0, 1, 1], [], []>} : vector<16x128xbf16>, vector<128x128xbf16>, vector<16x128xf32> -> vector<16x128xf32>
    %c0_25 = arith.constant 0 : index
    %c0_26 = arith.constant 0 : index
    %51 = vector.load %arg7[%c0_25, %c0_26] : memref<1x128xf32, #tpu.memory_space<vmem>>, vector<1x128xf32>
    %52 = vector.broadcast %51 : vector<1x128xf32> to vector<16x128xf32>
    %53 = arith.addf %50, %52 : vector<16x128xf32>
    %c0_27 = arith.constant 0 : index
    %c0_28 = arith.constant 0 : index
    %54 = vector.load %arg8[%c0_27, %c0_28] : memref<16x128xf32, #tpu.memory_space<vmem>>, vector<16x128xf32>
    tpu.vector_store %arg8[%c0_27, %c0_28], %53 {strides = array<i32>} : memref<16x128xf32, #tpu.memory_space<vmem>>, vector<16x128xf32>,
    return
  }
}

</mosaic_0001>

<llo_original>
// kernel: tpu_custom_call.1
$region0: #{tpu_custom_call.1}
  #allocation0 [shape = 'u32[]', space=smem, size = 0x4, offset = 0x4, fixed_abs, tag = 'smem constant byte address 0x4 - core index']
  #allocation1 [shape = 'u32[144,128]{1,0:T(1,128)}', space=vmem, size = 0x12000, scoped, tag = 'internal scratch']
  %s0 = inlined_call_operand.vmem [shape: s32[16,1], index: 0, kind: input, shape index: {}]
  %s1 = inlined_call_operand.hbm [shape: bf16[128,128], index: 1, kind: input, shape index: {}]
  %s2 = inlined_call_operand.vmem [shape: bf16[8,128], index: 2, kind: input, shape index: {}]
  %s3 = inlined_call_operand.hbm [shape: bf16[128,128], index: 3, kind: input, shape index: {}]
  %s4 = inlined_call_operand.hbm [shape: bf16[128,128], index: 4, kind: input, shape index: {}]
  %s5 = inlined_call_operand.hbm [shape: bf16[128,128], index: 5, kind: input, shape index: {}]
  %s6 = inlined_call_operand.hbm [shape: bf16[128,128], index: 6, kind: input, shape index: {}]
  %s7 = inlined_call_operand.vmem [shape: f32[1,128], index: 7, kind: input, shape index: {}]
  %s8 = inlined_call_operand.hbm [shape: f32[16,128], index: 8, kind: output, shape index: {}]
  %s9 = sld [smem:[#allocation0]]
  $region62: #{tpu_custom_call.1} parent=0
    _
  %s11 = ssub.s32 1, %s9
  %s12 = scalar_select 0, %s11, %s9
  $region1: #{tpu_custom_call.1} parent=0
    #allocation2 [shape = 'u8[32768]{0}', space=vmem, size = 0x8000, scoped, tag = 'input window, operand 1, single buffered']
    #allocation3 [shape = 's32[1]{0}', space=sflag, size = 0x4, scoped, tag = 'scoped memory for tpu_custom_call.1']
    #allocation4 [shape = 's32[1]{0}', space=sflag, size = 0x4, scoped, tag = 'scoped memory for tpu_custom_call.1']
    #allocation5 [shape = 'u8[32768]{0}', space=vmem, size = 0x8000, scoped, tag = 'input window, operand 3, single buffered']
    #allocation6 [shape = 's32[1]{0}', space=sflag, size = 0x4, scoped, tag = 'scoped memory for tpu_custom_call.1']
    #allocation7 [shape = 'u8[32768]{0}', space=vmem, size = 0x8000, scoped, tag = 'input window, operand 4, single buffered']
    #allocation8 [shape = 'u8[32768]{0}', space=vmem, size = 0x8000, scoped, tag = 'input window, operand 5, single buffered']
    #allocation9 [shape = 's32[1]{0}', space=sflag, size = 0x4, scoped, tag = 'scoped memory for tpu_custom_call.1']
    #allocation10 [shape = 'u8[32768]{0}', space=vmem, size = 0x8000, scoped, tag = 'input window, operand 6, single buffered']
    #allocation11 [shape = 'u8[8192]{0}', space=vmem, size = 0x2000, scoped, tag = 'output window, operand 0, single buffered']
    %13 = vsyncpa [#allocation3], 0
    %14 = vsyncpa [#allocation6], 0
    %15 = vsyncpa [#allocation9], 0
    %16 = vsyncpa [#allocation4], 0
    // Predicated region
    $region2: #{tpu_custom_call.1} parent=1 // pred_check
      _
    $region3: #{tpu_custom_call.1} parent=1 // pred_check_branch
      %18 = sbr.rel (0) target = $region5
    $region4: #{tpu_custom_call.1} parent=1 // pred_region
      _
    $region5: #{tpu_custom_call.1} parent=1 // pred_fallthru
      _
    // Predicated region
    $region6: #{tpu_custom_call.1} parent=1 // pred_check
      _
    $region7: #{tpu_custom_call.1} parent=1 // pred_check_branch
      %20 = sbr.rel (0) target = $region9
    $region8: #{tpu_custom_call.1} parent=1 // pred_region
      %s22 = ssub.s32 1024, 1024
      %23 = vsyncadd [#allocation3], %s22
      %s24 = sshll.u32 [#allocation2], 4
      %s25 = int_to_ptr.vmem [resolvable:$true] %s24
      %30 = dma.hbm_to_vmem [thread:$0]  %s1, 1024, %s25, [#allocation3], 64, 64, 4
    $region9: #{tpu_custom_call.1} parent=1 // pred_fallthru
      _
    // Predicated region
    $region10: #{tpu_custom_call.1} parent=1 // pred_check
      _
    $region11: #{tpu_custom_call.1} parent=1 // pred_check_branch
      %32 = sbr.rel (0) target = $region13
    $region12: #{tpu_custom_call.1} parent=1 // pred_region
      _
    $region13: #{tpu_custom_call.1} parent=1 // pred_fallthru
      _
    // Predicated region
    $region14: #{tpu_custom_call.1} parent=1 // pred_check
      _
    $region15: #{tpu_custom_call.1} parent=1 // pred_check_branch
      %34 = sbr.rel (0) target = $region17
    $region16: #{tpu_custom_call.1} parent=1 // pred_region
      %s36 = ssub.s32 1024, 1024
      %37 = vsyncadd [#allocation6], %s36
      %s38 = sshll.u32 [#allocation5], 4
      %s39 = int_to_ptr.vmem [resolvable:$true] %s38
      %44 = dma.hbm_to_vmem [thread:$0]  %s3, 1024, %s39, [#allocation6], 64, 64, 4
    $region17: #{tpu_custom_call.1} parent=1 // pred_fallthru
      _
    // Predicated region
    $region18: #{tpu_custom_call.1} parent=1 // pred_check
      _
    $region19: #{tpu_custom_call.1} parent=1 // pred_check_branch
      %46 = sbr.rel (0) target = $region21
    $region20: #{tpu_custom_call.1} parent=1 // pred_region
      %s48 = ssub.s32 1024, 1024
      %49 = vsyncadd [#allocation6], %s48
      %s50 = sshll.u32 [#allocation7], 4
      %s51 = int_to_ptr.vmem [resolvable:$true] %s50
      %56 = dma.hbm_to_vmem [thread:$0]  %s4, 1024, %s51, [#allocation6], 64, 64, 4
    $region21: #{tpu_custom_call.1} parent=1 // pred_fallthru
      _
    // Predicated region
    $region22: #{tpu_custom_call.1} parent=1 // pred_check
      _
    $region23: #{tpu_custom_call.1} parent=1 // pred_check_branch
      %58 = sbr.rel (0) target = $region25
    $region24: #{tpu_custom_call.1} parent=1 // pred_region
      %s60 = ssub.s32 1024, 1024
      %61 = vsyncadd [#allocation9], %s60
      %s62 = sshll.u32 [#allocation8], 4
      %s63 = int_to_ptr.vmem [resolvable:$true] %s62
      %68 = dma.hbm_to_vmem [thread:$0]  %s5, 1024, %s63, [#allocation9], 64, 64, 4
    $region25: #{tpu_custom_call.1} parent=1 // pred_fallthru
      _
    // Predicated region
    $region26: #{tpu_custom_call.1} parent=1 // pred_check
      _
    $region27: #{tpu_custom_call.1} parent=1 // pred_check_branch
      %70 = sbr.rel (0) target = $region29
    $region28: #{tpu_custom_call.1} parent=1 // pred_region
      %s72 = ssub.s32 1024, 1024
      %73 = vsyncadd [#allocation9], %s72
      %s74 = sshll.u32 [#allocation10], 4
      %s75 = int_to_ptr.vmem [resolvable:$true] %s74
      %80 = dma.hbm_to_vmem [thread:$0]  %s6, 1024, %s75, [#allocation9], 64, 64, 4
    $region29: #{tpu_custom_call.1} parent=1 // pred_fallthru
      _
    // Predicated region
    $region30: #{tpu_custom_call.1} parent=1 // pred_check
      _
    $region31: #{tpu_custom_call.1} parent=1 // pred_check_branch
      %82 = sbr.rel (0) target = $region33
    $region32: #{tpu_custom_call.1} parent=1 // pred_region
      _
    $region33: #{tpu_custom_call.1} parent=1 // pred_fallthru
      _
    // Predicated region
    $region34: #{tpu_custom_call.1} parent=1 // pred_check
      _
    $region35: #{tpu_custom_call.1} parent=1 // pred_check_branch
      %84 = sbr.rel (0) target = $region37
    $region36: #{tpu_custom_call.1} parent=1 // pred_region
      %85 = dma.done [#allocation3], 1024
    $region37: #{tpu_custom_call.1} parent=1 // pred_fallthru
      _
    // Predicated region
    $region38: #{tpu_custom_call.1} parent=1 // pred_check
      _
    $region39: #{tpu_custom_call.1} parent=1 // pred_check_branch
      %87 = sbr.rel (0) target = $region41
    $region40: #{tpu_custom_call.1} parent=1 // pred_region
      %88 = dma.done [#allocation6], 1024
    $region41: #{tpu_custom_call.1} parent=1 // pred_fallthru
      _
    // Predicated region
    $region42: #{tpu_custom_call.1} parent=1 // pred_check
      _
    $region43: #{tpu_custom_call.1} parent=1 // pred_check_branch
      %90 = sbr.rel (0) target = $region45
    $region44: #{tpu_custom_call.1} parent=1 // pred_region
      %91 = dma.done [#allocation6], 1024
    $region45: #{tpu_custom_call.1} parent=1 // pred_fallthru
      _
    // Predicated region
    $region46: #{tpu_custom_call.1} parent=1 // pred_check
      _
    $region47: #{tpu_custom_call.1} parent=1 // pred_check_branch
      %93 = sbr.rel (0) target = $region49
    $region48: #{tpu_custom_call.1} parent=1 // pred_region
      %94 = dma.done [#allocation9], 1024
    $region49: #{tpu_custom_call.1} parent=1 // pred_fallthru
      _
    // Predicated region
    $region50: #{tpu_custom_call.1} parent=1 // pred_check
      _
    $region51: #{tpu_custom_call.1} parent=1 // pred_check_branch
      %96 = sbr.rel (0) target = $region53
    $region52: #{tpu_custom_call.1} parent=1 // pred_region
      %97 = dma.done [#allocation9], 1024
    $region53: #{tpu_custom_call.1} parent=1 // pred_fallthru
      _
    %v99 = vld [vmem:[%s0] sm:$0xff]
    %v100 = vld [vmem:[%s0 + $0x8] sm:$0xff]
    %v101 = vlaneseq
    %v102 = vand.u32 %v101, 127
    %103 = vset.pattern.permute.xlu0 0
    %104 = vperm.xlu0 %103, %v99
    %v105 = vpop.permute.xlu0 %104
    %106 = vset.pattern.permute.xlu0 0
    %107 = vperm.xlu0 %106, %v100
    %v108 = vpop.permute.xlu0 %107
    %vm109 = vcmp.eq.s32.totalorder %v102, %v105
    %vm110 = vcmp.eq.s32.totalorder %v102, %v108
    %v111 = vsel %vm109, 1.0, 0.0
    %v112 = vsel %vm110, 1.0, 0.0
    %v113 = vpack.c.bf16 %v112, %v111
    %v114 = vld [vmem:[#allocation2] sm:$0xf]
    %v115 = vld [vmem:[#allocation2 + $0x4] sm:$0xf]
    %v116 = vld [vmem:[#allocation2 + $0x8] sm:$0xf]
    %v117 = vld [vmem:[#allocation2 + $0xc] sm:$0xf]
    %v118 = vld [vmem:[#allocation2 + $0x10] sm:$0xf]
    %v119 = vld [vmem:[#allocation2 + $0x14] sm:$0xf]
    %v120 = vld [vmem:[#allocation2 + $0x18] sm:$0xf]
    %v121 = vld [vmem:[#allocation2 + $0x1c] sm:$0xf]
    %v122 = vld [vmem:[#allocation2 + $0x20] sm:$0xf]
    %v123 = vld [vmem:[#allocation2 + $0x24] sm:$0xf]
    %v124 = vld [vmem:[#allocation2 + $0x28] sm:$0xf]
    %v125 = vld [vmem:[#allocation2 + $0x2c] sm:$0xf]
    %v126 = vld [vmem:[#allocation2 + $0x30] sm:$0xf]
    %v127 = vld [vmem:[#allocation2 + $0x34] sm:$0xf]
    %v128 = vld [vmem:[#allocation2 + $0x38] sm:$0xf]
    %v129 = vld [vmem:[#allocation2 + $0x3c] sm:$0xf]
    %v130 = vld [vmem:[%s2] sm:$0xf]
    %v131 = vunpack.c.l.bf16 %v130
    %v148 = vunpack.c.l.b16 %v114
    %v149 = vunpack.c.l.b16 %v115
    %v150 = vunpack.c.l.b16 %v116
    %v151 = vunpack.c.l.b16 %v117
    %v152 = vunpack.c.l.b16 %v118
    %v153 = vunpack.c.l.b16 %v119
    %v154 = vunpack.c.l.b16 %v120
    %v155 = vunpack.c.l.b16 %v121
    %v156 = vunpack.c.l.b16 %v122
    %v157 = vunpack.c.l.b16 %v123
    %v158 = vunpack.c.l.b16 %v124
    %v159 = vunpack.c.l.b16 %v125
    %v160 = vunpack.c.l.b16 %v126
    %v161 = vunpack.c.l.b16 %v127
    %v162 = vunpack.c.l.b16 %v128
    %v163 = vunpack.c.l.b16 %v129
    %v164 = vpack.c.b16 %v149, %v148
    %v165 = vpack.c.b16 %v151, %v150
    %v166 = vpack.c.b16 %v153, %v152
    %v167 = vpack.c.b16 %v155, %v154
    %v168 = vpack.c.b16 %v157, %v156
    %v169 = vpack.c.b16 %v159, %v158
    %v170 = vpack.c.b16 %v161, %v160
    %v171 = vpack.c.b16 %v163, %v162
    %180 = vmatprep.subr.bf16.mxu0 0
    %181 = vmatpush1.bf16.msra.mxu0 %v164
    %182 = vmatprep.subr.bf16.mxu0 0
    %183 = vmatpush1.bf16.msra.mxu0 %v165
    %184 = vmatprep.subr.bf16.mxu0 0
    %185 = vmatpush1.bf16.msra.mxu0 %v166
    %186 = vmatprep.subr.bf16.mxu0 0
    %187 = vmatpush1.bf16.msra.mxu0 %v167
    %188 = vmatprep.subr.bf16.mxu0 0
    %189 = vmatpush1.bf16.msra.mxu0 %v168
    %190 = vmatprep.subr.bf16.mxu0 0
    %191 = vmatpush1.bf16.msra.mxu0 %v169
    %192 = vmatprep.subr.bf16.mxu0 0
    %193 = vmatpush1.bf16.msra.mxu0 %v170
    %194 = vmatprep.subr.bf16.mxu0 0
    %195 = vmatpush1.bf16.msra.mxu0 %v171
    %196 = vmatprep.subr.bf16.mxu0 0
    %197 = vmatpush1.bf16.msra.mxu0 0
    %198 = vmatprep.subr.bf16.mxu0 0
    %199 = vmatpush1.bf16.msra.mxu0 0
    %200 = vmatprep.subr.bf16.mxu0 0
    %201 = vmatpush1.bf16.msra.mxu0 0
    %202 = vmatprep.subr.bf16.mxu0 0
    %203 = vmatpush1.bf16.msra.mxu0 0
    %204 = vmatprep.subr.bf16.mxu0 0
    %205 = vmatpush1.bf16.msra.mxu0 0
    %206 = vmatprep.subr.bf16.mxu0 0
    %207 = vmatpush1.bf16.msra.mxu0 0
    %208 = vmatprep.subr.bf16.mxu0 0
    %209 = vmatpush1.bf16.msra.mxu0 0
    %210 = vmatprep.subr.bf16.mxu0 0
    %211 = vmatpush1.bf16.msra.mxu0 0
    %212 = vmatprep.mubr.bf16.mxu0 0
    %213 = vmatmul.mubr.bf16.gmra.mrb[0].mxu0 %v113
    %v214 = vpop.f32.mrb[0].mxu0
    %v215 = vadd.f32 %v131, %v214
    %v216 = vpop.f32.mrb[0].mxu0
    %v217 = vpop.f32.mrb[0].mxu0
    %v218 = vadd.f32 %v131, %v217
    %v219 = vpop.f32.mrb[0].mxu0
    %220 = vdwg.mxu0
    %v221 = vpack.c.bf16 %v218, %v215
    %v222 = vld [vmem:[#allocation5] sm:$0xf]
    %v223 = vld [vmem:[#allocation5 + $0x4] sm:$0xf]
    %v224 = vld [vmem:[#allocation5 + $0x8] sm:$0xf]
    %v225 = vld [vmem:[#allocation5 + $0xc] sm:$0xf]
    %v226 = vld [vmem:[#allocation5 + $0x10] sm:$0xf]
    %v227 = vld [vmem:[#allocation5 + $0x14] sm:$0xf]
    %v228 = vld [vmem:[#allocation5 + $0x18] sm:$0xf]
    %v229 = vld [vmem:[#allocation5 + $0x1c] sm:$0xf]
    %v230 = vld [vmem:[#allocation5 + $0x20] sm:$0xf]
    %v231 = vld [vmem:[#allocation5 + $0x24] sm:$0xf]
    %v232 = vld [vmem:[#allocation5 + $0x28] sm:$0xf]
    %v233 = vld [vmem:[#allocation5 + $0x2c] sm:$0xf]
    %v234 = vld [vmem:[#allocation5 + $0x30] sm:$0xf]
    %v235 = vld [vmem:[#allocation5 + $0x34] sm:$0xf]
    %v236 = vld [vmem:[#allocation5 + $0x38] sm:$0xf]
    %v237 = vld [vmem:[#allocation5 + $0x3c] sm:$0xf]
    %v254 = vunpack.c.l.b16 %v222
    %v255 = vunpack.c.l.b16 %v223
    %v256 = vunpack.c.l.b16 %v224
    %v257 = vunpack.c.l.b16 %v225
    %v258 = vunpack.c.l.b16 %v226
    %v259 = vunpack.c.l.b16 %v227
    %v260 = vunpack.c.l.b16 %v228
    %v261 = vunpack.c.l.b16 %v229
    %v262 = vunpack.c.l.b16 %v230
    %v263 = vunpack.c.l.b16 %v231
    %v264 = vunpack.c.l.b16 %v232
    %v265 = vunpack.c.l.b16 %v233
    %v266 = vunpack.c.l.b16 %v234
    %v267 = vunpack.c.l.b16 %v235
    %v268 = vunpack.c.l.b16 %v236
    %v269 = vunpack.c.l.b16 %v237
    %v270 = vpack.c.b16 %v255, %v254
    %v271 = vpack.c.b16 %v257, %v256
    %v272 = vpack.c.b16 %v259, %v258
    %v273 = vpack.c.b16 %v261, %v260
    %v274 = vpack.c.b16 %v263, %v262
    %v275 = vpack.c.b16 %v265, %v264
    %v276 = vpack.c.b16 %v267, %v266
    %v277 = vpack.c.b16 %v269, %v268
    %286 = vmatprep.subr.bf16.mxu0 0
    %287 = vmatpush1.bf16.msra.mxu0 %v270
    %288 = vmatprep.subr.bf16.mxu0 0
    %289 = vmatpush1.bf16.msra.mxu0 %v271
    %290 = vmatprep.subr.bf16.mxu0 0
    %291 = vmatpush1.bf16.msra.mxu0 %v272
    %292 = vmatprep.subr.bf16.mxu0 0
    %293 = vmatpush1.bf16.msra.mxu0 %v273
    %294 = vmatprep.subr.bf16.mxu0 0
    %295 = vmatpush1.bf16.msra.mxu0 %v274
    %296 = vmatprep.subr.bf16.mxu0 0
    %297 = vmatpush1.bf16.msra.mxu0 %v275
    %298 = vmatprep.subr.bf16.mxu0 0
    %299 = vmatpush1.bf16.msra.mxu0 %v276
    %300 = vmatprep.subr.bf16.mxu0 0
    %301 = vmatpush1.bf16.msra.mxu0 %v277
    %302 = vmatprep.subr.bf16.mxu0 0
    %303 = vmatpush1.bf16.msra.mxu0 0
    %304 = vmatprep.subr.bf16.mxu0 0
    %305 = vmatpush1.bf16.msra.mxu0 0
    %306 = vmatprep.subr.bf16.mxu0 0
    %307 = vmatpush1.bf16.msra.mxu0 0
    %308 = vmatprep.subr.bf16.mxu0 0
    %309 = vmatpush1.bf16.msra.mxu0 0
    %310 = vmatprep.subr.bf16.mxu0 0
    %311 = vmatpush1.bf16.msra.mxu0 0
    %312 = vmatprep.subr.bf16.mxu0 0
    %313 = vmatpush1.bf16.msra.mxu0 0
    %314 = vmatprep.subr.bf16.mxu0 0
    %315 = vmatpush1.bf16.msra.mxu0 0
    %316 = vmatprep.subr.bf16.mxu0 0
    %317 = vmatpush1.bf16.msra.mxu0 0
    %318 = vmatprep.mubr.bf16.mxu0 0
    %319 = vmatmul.mubr.bf16.gmra.mrb[0].mxu0 %v221
    %v320 = vpop.f32.mrb[0].mxu0
    %v321 = vadd.f32 0.0, %v320
    %v322 = vpop.f32.mrb[0].mxu0
    %v323 = vpop.f32.mrb[0].mxu0
    %v324 = vadd.f32 0.0, %v323
    %v325 = vpop.f32.mrb[0].mxu0
    %326 = vdwg.mxu0
    %v327 = vld [vmem:[#allocation7] sm:$0xf]
    %v328 = vld [vmem:[#allocation7 + $0x4] sm:$0xf]
    %v329 = vld [vmem:[#allocation7 + $0x8] sm:$0xf]
    %v330 = vld [vmem:[#allocation7 + $0xc] sm:$0xf]
    %v331 = vld [vmem:[#allocation7 + $0x10] sm:$0xf]
    %v332 = vld [vmem:[#allocation7 + $0x14] sm:$0xf]
    %v333 = vld [vmem:[#allocation7 + $0x18] sm:$0xf]
    %v334 = vld [vmem:[#allocation7 + $0x1c] sm:$0xf]
    %v335 = vld [vmem:[#allocation7 + $0x20] sm:$0xf]
    %v336 = vld [vmem:[#allocation7 + $0x24] sm:$0xf]
    %v337 = vld [vmem:[#allocation7 + $0x28] sm:$0xf]
    %v338 = vld [vmem:[#allocation7 + $0x2c] sm:$0xf]
    %v339 = vld [vmem:[#allocation7 + $0x30] sm:$0xf]
    %v340 = vld [vmem:[#allocation7 + $0x34] sm:$0xf]
    %v341 = vld [vmem:[#allocation7 + $0x38] sm:$0xf]
    %v342 = vld [vmem:[#allocation7 + $0x3c] sm:$0xf]
    %v359 = vunpack.c.l.b16 %v327
    %v360 = vunpack.c.l.b16 %v328
    %v361 = vunpack.c.l.b16 %v329
    %v362 = vunpack.c.l.b16 %v330
    %v363 = vunpack.c.l.b16 %v331
    %v364 = vunpack.c.l.b16 %v332
    %v365 = vunpack.c.l.b16 %v333
    %v366 = vunpack.c.l.b16 %v334
    %v367 = vunpack.c.l.b16 %v335
    %v368 = vunpack.c.l.b16 %v336
    %v369 = vunpack.c.l.b16 %v337
    %v370 = vunpack.c.l.b16 %v338
    %v371 = vunpack.c.l.b16 %v339
    %v372 = vunpack.c.l.b16 %v340
    %v373 = vunpack.c.l.b16 %v341
    %v374 = vunpack.c.l.b16 %v342
    %v375 = vpack.c.b16 %v360, %v359
    %v376 = vpack.c.b16 %v362, %v361
    %v377 = vpack.c.b16 %v364, %v363
    %v378 = vpack.c.b16 %v366, %v365
    %v379 = vpack.c.b16 %v368, %v367
    %v380 = vpack.c.b16 %v370, %v369
    %v381 = vpack.c.b16 %v372, %v371
    %v382 = vpack.c.b16 %v374, %v373
    %391 = vmatprep.subr.bf16.mxu0 0
    %392 = vmatpush1.bf16.msra.mxu0 %v375
    %393 = vmatprep.subr.bf16.mxu0 0
    %394 = vmatpush1.bf16.msra.mxu0 %v376
    %395 = vmatprep.subr.bf16.mxu0 0
    %396 = vmatpush1.bf16.msra.mxu0 %v377
    %397 = vmatprep.subr.bf16.mxu0 0
    %398 = vmatpush1.bf16.msra.mxu0 %v378
    %399 = vmatprep.subr.bf16.mxu0 0
    %400 = vmatpush1.bf16.msra.mxu0 %v379
    %401 = vmatprep.subr.bf16.mxu0 0
    %402 = vmatpush1.bf16.msra.mxu0 %v380
    %403 = vmatprep.subr.bf16.mxu0 0
    %404 = vmatpush1.bf16.msra.mxu0 %v381
    %405 = vmatprep.subr.bf16.mxu0 0
    %406 = vmatpush1.bf16.msra.mxu0 %v382
    %407 = vmatprep.subr.bf16.mxu0 0
    %408 = vmatpush1.bf16.msra.mxu0 0
    %409 = vmatprep.subr.bf16.mxu0 0
    %410 = vmatpush1.bf16.msra.mxu0 0
    %411 = vmatprep.subr.bf16.mxu0 0
    %412 = vmatpush1.bf16.msra.mxu0 0
    %413 = vmatprep.subr.bf16.mxu0 0
    %414 = vmatpush1.bf16.msra.mxu0 0
    %415 = vmatprep.subr.bf16.mxu0 0
    %416 = vmatpush1.bf16.msra.mxu0 0
    %417 = vmatprep.subr.bf16.mxu0 0
    %418 = vmatpush1.bf16.msra.mxu0 0
    %419 = vmatprep.subr.bf16.mxu0 0
    %420 = vmatpush1.bf16.msra.mxu0 0
    %421 = vmatprep.subr.bf16.mxu0 0
    %422 = vmatpush1.bf16.msra.mxu0 0
    %423 = vmatprep.mubr.bf16.mxu0 0
    %424 = vmatmul.mubr.bf16.gmra.mrb[0].mxu0 %v221
    %v425 = vpop.f32.mrb[0].mxu0
    %v426 = vadd.f32 0.0, %v425
    %v427 = vpop.f32.mrb[0].mxu0
    %v428 = vpop.f32.mrb[0].mxu0
    %v429 = vadd.f32 0.0, %v428
    %v430 = vpop.f32.mrb[0].mxu0
    %431 = vdwg.mxu0
    %v432 = vld [vmem:[#allocation8] sm:$0xf]
    %v433 = vld [vmem:[#allocation8 + $0x4] sm:$0xf]
    %v434 = vld [vmem:[#allocation8 + $0x8] sm:$0xf]
    %v435 = vld [vmem:[#allocation8 + $0xc] sm:$0xf]
    %v436 = vld [vmem:[#allocation8 + $0x10] sm:$0xf]
    %v437 = vld [vmem:[#allocation8 + $0x14] sm:$0xf]
    %v438 = vld [vmem:[#allocation8 + $0x18] sm:$0xf]
    %v439 = vld [vmem:[#allocation8 + $0x1c] sm:$0xf]
    %v440 = vld [vmem:[#allocation8 + $0x20] sm:$0xf]
    %v441 = vld [vmem:[#allocation8 + $0x24] sm:$0xf]
    %v442 = vld [vmem:[#allocation8 + $0x28] sm:$0xf]
    %v443 = vld [vmem:[#allocation8 + $0x2c] sm:$0xf]
    %v444 = vld [vmem:[#allocation8 + $0x30] sm:$0xf]
    %v445 = vld [vmem:[#allocation8 + $0x34] sm:$0xf]
    %v446 = vld [vmem:[#allocation8 + $0x38] sm:$0xf]
    %v447 = vld [vmem:[#allocation8 + $0x3c] sm:$0xf]
    %v464 = vunpack.c.l.b16 %v432
    %v465 = vunpack.c.l.b16 %v433
    %v466 = vunpack.c.l.b16 %v434
    %v467 = vunpack.c.l.b16 %v435
    %v468 = vunpack.c.l.b16 %v436
    %v469 = vunpack.c.l.b16 %v437
    %v470 = vunpack.c.l.b16 %v438
    %v471 = vunpack.c.l.b16 %v439
    %v472 = vunpack.c.l.b16 %v440
    %v473 = vunpack.c.l.b16 %v441
    %v474 = vunpack.c.l.b16 %v442
    %v475 = vunpack.c.l.b16 %v443
    %v476 = vunpack.c.l.b16 %v444
    %v477 = vunpack.c.l.b16 %v445
    %v478 = vunpack.c.l.b16 %v446
    %v479 = vunpack.c.l.b16 %v447
    %v480 = vpack.c.b16 %v465, %v464
    %v481 = vpack.c.b16 %v467, %v466
    %v482 = vpack.c.b16 %v469, %v468
    %v483 = vpack.c.b16 %v471, %v470
    %v484 = vpack.c.b16 %v473, %v472
    %v485 = vpack.c.b16 %v475, %v474
    %v486 = vpack.c.b16 %v477, %v476
    %v487 = vpack.c.b16 %v479, %v478
    %496 = vmatprep.subr.bf16.mxu0 0
    %497 = vmatpush1.bf16.msra.mxu0 %v480
    %498 = vmatprep.subr.bf16.mxu0 0
    %499 = vmatpush1.bf16.msra.mxu0 %v481
    %500 = vmatprep.subr.bf16.mxu0 0
    %501 = vmatpush1.bf16.msra.mxu0 %v482
    %502 = vmatprep.subr.bf16.mxu0 0
    %503 = vmatpush1.bf16.msra.mxu0 %v483
    %504 = vmatprep.subr.bf16.mxu0 0
    %505 = vmatpush1.bf16.msra.mxu0 %v484
    %506 = vmatprep.subr.bf16.mxu0 0
    %507 = vmatpush1.bf16.msra.mxu0 %v485
    %508 = vmatprep.subr.bf16.mxu0 0
    %509 = vmatpush1.bf16.msra.mxu0 %v486
    %510 = vmatprep.subr.bf16.mxu0 0
    %511 = vmatpush1.bf16.msra.mxu0 %v487
    %512 = vmatprep.subr.bf16.mxu0 0
    %513 = vmatpush1.bf16.msra.mxu0 0
    %514 = vmatprep.subr.bf16.mxu0 0
    %515 = vmatpush1.bf16.msra.mxu0 0
    %516 = vmatprep.subr.bf16.mxu0 0
    %517 = vmatpush1.bf16.msra.mxu0 0
    %518 = vmatprep.subr.bf16.mxu0 0
    %519 = vmatpush1.bf16.msra.mxu0 0
    %520 = vmatprep.subr.bf16.mxu0 0
    %521 = vmatpush1.bf16.msra.mxu0 0
    %522 = vmatprep.subr.bf16.mxu0 0
    %523 = vmatpush1.bf16.msra.mxu0 0
    %524 = vmatprep.subr.bf16.mxu0 0
    %525 = vmatpush1.bf16.msra.mxu0 0
    %526 = vmatprep.subr.bf16.mxu0 0
    %527 = vmatpush1.bf16.msra.mxu0 0
    %528 = vmatprep.mubr.bf16.mxu0 0
    %529 = vmatmul.mubr.bf16.gmra.mrb[0].mxu0 %v221
    %v530 = vpop.f32.mrb[0].mxu0
    %v531 = vadd.f32 0.0, %v530
    %v532 = vpop.f32.mrb[0].mxu0
    %v533 = vpop.f32.mrb[0].mxu0
    %v534 = vadd.f32 0.0, %v533
    %v535 = vpop.f32.mrb[0].mxu0
    %536 = vdwg.mxu0
    %v537 = vpack.c.bf16 %v426, %v426
    %v538 = vpack.c.bf16 %v429, %v429
    %v539 = vpack.c.bf16 %v321, %v321
    %v540 = vpack.c.bf16 %v324, %v324
    %v541 = vpack.c.bf16 %v531, %v531
    %v542 = vpack.c.bf16 %v534, %v534
    %543 = vmatprep.subr.bf16.mxu0 0
    %544 = vmatpush1.bf16.xpose.msra.mxu0 %v539
    %545 = vmatprep.subr.bf16.mxu0 0
    %546 = vmatpush1.bf16.xpose.msra.mxu0 0
    %547 = vmatprep.subr.bf16.mxu0 0
    %548 = vmatpush1.bf16.xpose.msra.mxu0 0
    %549 = vmatprep.subr.bf16.mxu0 0
    %550 = vmatpush1.bf16.xpose.msra.mxu0 0
    %551 = vmatprep.subr.bf16.mxu0 0
    %552 = vmatpush1.bf16.xpose.msra.mxu0 0
    %553 = vmatprep.subr.bf16.mxu0 0
    %554 = vmatpush1.bf16.xpose.msra.mxu0 0
    %555 = vmatprep.subr.bf16.mxu0 0
    %556 = vmatpush1.bf16.xpose.msra.mxu0 0
    %557 = vmatprep.subr.bf16.mxu0 0
    %558 = vmatpush1.bf16.xpose.msra.mxu0 0
    %559 = vmatprep.subr.bf16.mxu0 0
    %560 = vmatpush1.bf16.xpose.msra.mxu0 0
    %561 = vmatprep.subr.bf16.mxu0 0
    %562 = vmatpush1.bf16.xpose.msra.mxu0 0
    %563 = vmatprep.subr.bf16.mxu0 0
    %564 = vmatpush1.bf16.xpose.msra.mxu0 0
    %565 = vmatprep.subr.bf16.mxu0 0
    %566 = vmatpush1.bf16.xpose.msra.mxu0 0
    %567 = vmatprep.subr.bf16.mxu0 0
    %568 = vmatpush1.bf16.xpose.msra.mxu0 0
    %569 = vmatprep.subr.bf16.mxu0 0
    %570 = vmatpush1.bf16.xpose.msra.mxu0 0
    %571 = vmatprep.subr.bf16.mxu0 0
    %572 = vmatpush1.bf16.xpose.msra.mxu0 0
    %573 = vmatprep.subr.bf16.mxu0 0
    %574 = vmatpush1.bf16.xpose.msra.mxu0 0
    %575 = vmatprep.mubr.bf16.mxu0 0
    %576 = vmatmul.mubr.bf16.gmra.mrb[0].mxu0 %v537
    %v577 = vpop.f32.mrb[0].mxu0
    %v578 = vadd.f32 0.0, %v577
    %v579 = vpop.f32.mrb[0].mxu0
    %v580 = vpop.f32.mrb[0].mxu0
    %v581 = vpop.f32.mrb[0].mxu0
    %582 = vdwg.mxu0
    %583 = vmatprep.subr.bf16.mxu0 0
    %584 = vmatpush1.bf16.xpose.msra.mxu0 %v540
    %585 = vmatprep.subr.bf16.mxu0 0
    %586 = vmatpush1.bf16.xpose.msra.mxu0 0
    %587 = vmatprep.subr.bf16.mxu0 0
    %588 = vmatpush1.bf16.xpose.msra.mxu0 0
    %589 = vmatprep.subr.bf16.mxu0 0
    %590 = vmatpush1.bf16.xpose.msra.mxu0 0
    %591 = vmatprep.subr.bf16.mxu0 0
    %592 = vmatpush1.bf16.xpose.msra.mxu0 0
    %593 = vmatprep.subr.bf16.mxu0 0
    %594 = vmatpush1.bf16.xpose.msra.mxu0 0
    %595 = vmatprep.subr.bf16.mxu0 0
    %596 = vmatpush1.bf16.xpose.msra.mxu0 0
    %597 = vmatprep.subr.bf16.mxu0 0
    %598 = vmatpush1.bf16.xpose.msra.mxu0 0
    %599 = vmatprep.subr.bf16.mxu0 0
    %600 = vmatpush1.bf16.xpose.msra.mxu0 0
    %601 = vmatprep.subr.bf16.mxu0 0
    %602 = vmatpush1.bf16.xpose.msra.mxu0 0
    %603 = vmatprep.subr.bf16.mxu0 0
    %604 = vmatpush1.bf16.xpose.msra.mxu0 0
    %605 = vmatprep.subr.bf16.mxu0 0
    %606 = vmatpush1.bf16.xpose.msra.mxu0 0
    %607 = vmatprep.subr.bf16.mxu0 0
    %608 = vmatpush1.bf16.xpose.msra.mxu0 0
    %609 = vmatprep.subr.bf16.mxu0 0
    %610 = vmatpush1.bf16.xpose.msra.mxu0 0
    %611 = vmatprep.subr.bf16.mxu0 0
    %612 = vmatpush1.bf16.xpose.msra.mxu0 0
    %613 = vmatprep.subr.bf16.mxu0 0
    %614 = vmatpush1.bf16.xpose.msra.mxu0 0
    %615 = vmatprep.mubr.bf16.mxu0 0
    %616 = vmatmul.mubr.bf16.gmra.mrb[0].mxu0 %v538
    %v617 = vpop.f32.mrb[0].mxu0
    %v618 = vadd.f32 0.0, %v617
    %v619 = vpop.f32.mrb[0].mxu0
    %v620 = vpop.f32.mrb[0].mxu0
    %v621 = vpop.f32.mrb[0].mxu0
    %622 = vdwg.mxu0
    %v623 = vmul.f32 %v578, 0.17677669
    %v624 = vmul.f32 %v618, 0.17677669
    %v625 = vlaneseq
    %v626 = vshrl.u32 %v625, 7
    %vm627 = vcmp.le.s32.totalorder %v102, %v626
    %v628 = vsel %vm627, %v623, -1e+30
    %v629 = vsel %vm627, %v624, -1e+30
    %vm630 = vcmask 64512
    %v631 = vsel %vm630, %v628, -inf
    %632 = vmax.xlane.f32.xlu0 %v631
    %v633 = vpop.xlane.xlu0 %632
    %v634 = vsel %vm630, %v629, -inf
    %635 = vmax.xlane.f32.xlu0 %v634
    %v636 = vpop.xlane.xlu0 %635
    %v637 = vsub.f32 %v628, %v633
    %v638 = vsub.f32 %v629, %v636
    %v639 = vmul.f32 %v637, 1.442695
    %v640 = vpow.pop %v639
    %v641 = vmul.f32 %v638, 1.442695
    %v642 = vpow.pop %v641
    %v643 = vsel %vm630, %v640, 0.0
    %644 = vadd.xlane.f32.xlu0 %v643
    %v645 = vpop.xlane.xlu0 %644
    %v646 = vsel %vm630, %v642, 0.0
    %647 = vadd.xlane.f32.xlu0 %v646
    %v648 = vpop.xlane.xlu0 %647
    %v649 = vrcp.pop %v645
    %v650 = vrcp.pop %v648
    %v651 = vmul.f32 %v640, %v649
    %v652 = vmul.f32 %v642, %v650
    %v653 = vpack.c.bf16 %v651, %v651
    %v654 = vpack.c.bf16 %v652, %v652
    %v656 = vsel %vm630, %v653, 0
    %vm658 = vcmask 1043456
    %v660 = vsel %vm658, %v541, 0
    %662 = vmatprep.subr.bf16.mxu0 0
    %663 = vmatpush1.bf16.msra.mxu0 %v660
    %664 = vmatprep.subr.bf16.mxu0 0
    %665 = vmatpush1.bf16.msra.mxu0 0
    %666 = vmatprep.subr.bf16.mxu0 0
    %667 = vmatpush1.bf16.msra.mxu0 0
    %668 = vmatprep.subr.bf16.mxu0 0
    %669 = vmatpush1.bf16.msra.mxu0 0
    %670 = vmatprep.subr.bf16.mxu0 0
    %671 = vmatpush1.bf16.msra.mxu0 0
    %672 = vmatprep.subr.bf16.mxu0 0
    %673 = vmatpush1.bf16.msra.mxu0 0
    %674 = vmatprep.subr.bf16.mxu0 0
    %675 = vmatpush1.bf16.msra.mxu0 0
    %676 = vmatprep.subr.bf16.mxu0 0
    %677 = vmatpush1.bf16.msra.mxu0 0
    %678 = vmatprep.subr.bf16.mxu0 0
    %679 = vmatpush1.bf16.msra.mxu0 0
    %680 = vmatprep.subr.bf16.mxu0 0
    %681 = vmatpush1.bf16.msra.mxu0 0
    %682 = vmatprep.subr.bf16.mxu0 0
    %683 = vmatpush1.bf16.msra.mxu0 0
    %684 = vmatprep.subr.bf16.mxu0 0
    %685 = vmatpush1.bf16.msra.mxu0 0
    %686 = vmatprep.subr.bf16.mxu0 0
    %687 = vmatpush1.bf16.msra.mxu0 0
    %688 = vmatprep.subr.bf16.mxu0 0
    %689 = vmatpush1.bf16.msra.mxu0 0
    %690 = vmatprep.subr.bf16.mxu0 0
    %691 = vmatpush1.bf16.msra.mxu0 0
    %692 = vmatprep.subr.bf16.mxu0 0
    %693 = vmatpush1.bf16.msra.mxu0 0
    %694 = vmatprep.mubr.bf16.mxu0 0
    %695 = vmatmul.mubr.bf16.gmra.mrb[0].mxu0 %v656
    %v696 = vpop.f32.mrb[0].mxu0
    %v697 = vadd.f32 0.0, %v696
    %v698 = vpop.f32.mrb[0].mxu0
    %v699 = vpop.f32.mrb[0].mxu0
    %v700 = vpop.f32.mrb[0].mxu0
    %701 = vdwg.mxu0
    %v703 = vsel %vm630, %v654, 0
    %v706 = vsel %vm658, %v542, 0
    %708 = vmatprep.subr.bf16.mxu0 0
    %709 = vmatpush1.bf16.msra.mxu0 %v706
    %710 = vmatprep.subr.bf16.mxu0 0
    %711 = vmatpush1.bf16.msra.mxu0 0
    %712 = vmatprep.subr.bf16.mxu0 0
    %713 = vmatpush1.bf16.msra.mxu0 0
    %714 = vmatprep.subr.bf16.mxu0 0
    %715 = vmatpush1.bf16.msra.mxu0 0
    %716 = vmatprep.subr.bf16.mxu0 0
    %717 = vmatpush1.bf16.msra.mxu0 0
    %718 = vmatprep.subr.bf16.mxu0 0
    %719 = vmatpush1.bf16.msra.mxu0 0
    %720 = vmatprep.subr.bf16.mxu0 0
    %721 = vmatpush1.bf16.msra.mxu0 0
    %722 = vmatprep.subr.bf16.mxu0 0
    %723 = vmatpush1.bf16.msra.mxu0 0
    %724 = vmatprep.subr.bf16.mxu0 0
    %725 = vmatpush1.bf16.msra.mxu0 0
    %726 = vmatprep.subr.bf16.mxu0 0
    %727 = vmatpush1.bf16.msra.mxu0 0
    %728 = vmatprep.subr.bf16.mxu0 0
    %729 = vmatpush1.bf16.msra.mxu0 0
    %730 = vmatprep.subr.bf16.mxu0 0
    %731 = vmatpush1.bf16.msra.mxu0 0
    %732 = vmatprep.subr.bf16.mxu0 0
    %733 = vmatpush1.bf16.msra.mxu0 0
    %734 = vmatprep.subr.bf16.mxu0 0
    %735 = vmatpush1.bf16.msra.mxu0 0
    %736 = vmatprep.subr.bf16.mxu0 0
    %737 = vmatpush1.bf16.msra.mxu0 0
    %738 = vmatprep.subr.bf16.mxu0 0
    %739 = vmatpush1.bf16.msra.mxu0 0
    %740 = vmatprep.mubr.bf16.mxu0 0
    %741 = vmatmul.mubr.bf16.gmra.mrb[0].mxu0 %v703
    %v742 = vpop.f32.mrb[0].mxu0
    %v743 = vadd.f32 0.0, %v742
    %v744 = vpop.f32.mrb[0].mxu0
    %v745 = vpop.f32.mrb[0].mxu0
    %v746 = vpop.f32.mrb[0].mxu0
    %747 = vdwg.mxu0
    %v748 = vpack.c.bf16 %v743, %v697
    %v749 = vld [vmem:[#allocation10] sm:$0xf]
    %v750 = vld [vmem:[#allocation10 + $0x4] sm:$0xf]
    %v751 = vld [vmem:[#allocation10 + $0x8] sm:$0xf]
    %v752 = vld [vmem:[#allocation10 + $0xc] sm:$0xf]
    %v753 = vld [vmem:[#allocation10 + $0x10] sm:$0xf]
    %v754 = vld [vmem:[#allocation10 + $0x14] sm:$0xf]
    %v755 = vld [vmem:[#allocation10 + $0x18] sm:$0xf]
    %v756 = vld [vmem:[#allocation10 + $0x1c] sm:$0xf]
    %v757 = vld [vmem:[#allocation10 + $0x20] sm:$0xf]
    %v758 = vld [vmem:[#allocation10 + $0x24] sm:$0xf]
    %v759 = vld [vmem:[#allocation10 + $0x28] sm:$0xf]
    %v760 = vld [vmem:[#allocation10 + $0x2c] sm:$0xf]
    %v761 = vld [vmem:[#allocation10 + $0x30] sm:$0xf]
    %v762 = vld [vmem:[#allocation10 + $0x34] sm:$0xf]
    %v763 = vld [vmem:[#allocation10 + $0x38] sm:$0xf]
    %v764 = vld [vmem:[#allocation10 + $0x3c] sm:$0xf]
    %v765 = vld [vmem:[%s7] sm:$0x1]
    %v767 = vlaneseq
    %v768 = vshrl.u32 %v767, 7
    %v769 = vsub.s32 0, %v768
    %v770 = vrot.slane %v765, %v769
    %v788 = vunpack.c.l.b16 %v749
    %v789 = vunpack.c.l.b16 %v750
    %v790 = vunpack.c.l.b16 %v751
    %v791 = vunpack.c.l.b16 %v752
    %v792 = vunpack.c.l.b16 %v753
    %v793 = vunpack.c.l.b16 %v754
    %v794 = vunpack.c.l.b16 %v755
    %v795 = vunpack.c.l.b16 %v756
    %v796 = vunpack.c.l.b16 %v757
    %v797 = vunpack.c.l.b16 %v758
    %v798 = vunpack.c.l.b16 %v759
    %v799 = vunpack.c.l.b16 %v760
    %v800 = vunpack.c.l.b16 %v761
    %v801 = vunpack.c.l.b16 %v762
    %v802 = vunpack.c.l.b16 %v763
    %v803 = vunpack.c.l.b16 %v764
    %v804 = vpack.c.b16 %v789, %v788
    %v805 = vpack.c.b16 %v791, %v790
    %v806 = vpack.c.b16 %v793, %v792
    %v807 = vpack.c.b16 %v795, %v794
    %v808 = vpack.c.b16 %v797, %v796
    %v809 = vpack.c.b16 %v799, %v798
    %v810 = vpack.c.b16 %v801, %v800
    %v811 = vpack.c.b16 %v803, %v802
    %820 = vmatprep.subr.bf16.mxu0 0
    %821 = vmatpush1.bf16.msra.mxu0 %v804
    %822 = vmatprep.subr.bf16.mxu0 0
    %823 = vmatpush1.bf16.msra.mxu0 %v805
    %824 = vmatprep.subr.bf16.mxu0 0
    %825 = vmatpush1.bf16.msra.mxu0 %v806
    %826 = vmatprep.subr.bf16.mxu0 0
    %827 = vmatpush1.bf16.msra.mxu0 %v807
    %828 = vmatprep.subr.bf16.mxu0 0
    %829 = vmatpush1.bf16.msra.mxu0 %v808
    %830 = vmatprep.subr.bf16.mxu0 0
    %831 = vmatpush1.bf16.msra.mxu0 %v809
    %832 = vmatprep.subr.bf16.mxu0 0
    %833 = vmatpush1.bf16.msra.mxu0 %v810
    %834 = vmatprep.subr.bf16.mxu0 0
    %835 = vmatpush1.bf16.msra.mxu0 %v811
    %836 = vmatprep.subr.bf16.mxu0 0
    %837 = vmatpush1.bf16.msra.mxu0 0
    %838 = vmatprep.subr.bf16.mxu0 0
    %839 = vmatpush1.bf16.msra.mxu0 0
    %840 = vmatprep.subr.bf16.mxu0 0
    %841 = vmatpush1.bf16.msra.mxu0 0
    %842 = vmatprep.subr.bf16.mxu0 0
    %843 = vmatpush1.bf16.msra.mxu0 0
    %844 = vmatprep.subr.bf16.mxu0 0
    %845 = vmatpush1.bf16.msra.mxu0 0
    %846 = vmatprep.subr.bf16.mxu0 0
    %847 = vmatpush1.bf16.msra.mxu0 0
    %848 = vmatprep.subr.bf16.mxu0 0
    %849 = vmatpush1.bf16.msra.mxu0 0
    %850 = vmatprep.subr.bf16.mxu0 0
    %851 = vmatpush1.bf16.msra.mxu0 0
    %852 = vmatprep.mubr.bf16.mxu0 0
    %853 = vmatmul.mubr.bf16.gmra.mrb[0].mxu0 %v748
    %v854 = vpop.f32.mrb[0].mxu0
    %v855 = vadd.f32 %v770, %v854
    %v856 = vpop.f32.mrb[0].mxu0
    %v857 = vpop.f32.mrb[0].mxu0
    %v858 = vadd.f32 %v770, %v857
    %v859 = vpop.f32.mrb[0].mxu0
    %860 = vdwg.mxu0
    %861 = vst [vmem:[#allocation11] sm:$0xff] %v855
    %862 = vst [vmem:[#allocation11 + $0x8] sm:$0xff] %v858
    // Predicated region
    $region54: #{tpu_custom_call.1} parent=1 // pred_check
      _
    $region55: #{tpu_custom_call.1} parent=1 // pred_check_branch
      %864 = sbr.rel (0) target = $region57
    $region56: #{tpu_custom_call.1} parent=1 // pred_region
      %s866 = ssub.s32 256, 256
      %867 = vsyncadd [#allocation4], %s866
      %s868 = sshll.u32 [#allocation11], 4
      %s869 = int_to_ptr.vmem [resolvable:$true] %s868
      %874 = dma.vmem_to_hbm [thread:$0]  %s869, 256, %s8, [#allocation4], 128, 128, 8
    $region57: #{tpu_custom_call.1} parent=1 // pred_fallthru
      _
    // Predicated region
    $region58: #{tpu_custom_call.1} parent=1 // pred_check
      _
    $region59: #{tpu_custom_call.1} parent=1 // pred_check_branch
      %876 = sbr.rel (0) target = $region61
    $region60: #{tpu_custom_call.1} parent=1 // pred_region
      %877 = dma.done [#allocation4], 256
    $region61: #{tpu_custom_call.1} parent=1 // pred_fallthru
      _
    %878 = vsyncpa [#allocation3], 1
    %879 = vsyncpa [#allocation6], 1
    %880 = vsyncpa [#allocation9], 1
    %881 = vsyncpa [#allocation4], 1

</llo_original>
